<compile_context>
chip_gen: v5e
topology: v5e:2x2
jax: 0.10.0
libtpu: 0.0.40
codegen_flags: <defaults>
</compile_context>

<pallas_src>
import jax
import jax.numpy as jnp
from jax.experimental import pallas as pl
from jax.experimental.pallas import tpu as pltpu

_LENGTH = 2                              # torch.narrow(x, dim=1, start=0, length=2)
_FAST_PATH_BYTES = 256 * 1024            # below this, plain XLA slicing wins
_TARGET_TILE_BYTES = 2 * 1024 * 1024     # ~2 MiB of input per grid step
_MAX_TILE_ROWS = 4096


def _round_up(n: int, m: int) -> int:
    return ((n + m - 1) // m) * m


def _narrow_dim1_kernel(x_ref, o_ref):
    # x_ref: (tr, cblk) tile in VMEM; o_ref: (tr, _LENGTH) tile in VMEM.
    # Static column slice of the first two columns of this row tile.
    o_ref[...] = x_ref[:, 0:_LENGTH]


def _narrow_dim1_len2_pallas(x: jax.Array) -> jax.Array:
    """Pallas path: tiled copy of x[:, 0:2]."""
    rows, cols = x.shape
    itemsize = jnp.dtype(x.dtype).itemsize

    # Column block: only the first lane tile is needed (result is cols 0..1).
    # If cols <= 128 we take the full (untiled) dim.
    cblk = cols if cols <= 128 else 128

    # Sublane packing granularity (8 for f32, 16 for bf16, 32 for int8).
    sublane_mult = max(8, 32 // itemsize)

    # Row tile sized for ~2 MiB of input per step, capped at 4096 rows.
    preferred_tr = max(sublane_mult, _TARGET_TILE_BYTES // (cblk * itemsize))
    preferred_tr = min(_round_up(preferred_tr, sublane_mult), _MAX_TILE_ROWS)

    if rows <= preferred_tr:
        tr = rows  # full dim — always legal regardless of divisibility
    else:
        # Keep >= 2 grid steps so both v7x TensorCores get row tiles.
        tr = min(preferred_tr, _round_up(pl.cdiv(rows, 2), sublane_mult))
        tr = max(sublane_mult, tr)

    grid = (pl.cdiv(rows, tr),)

    return pl.pallas_call(
        _narrow_dim1_kernel,
        out_shape=jax.ShapeDtypeStruct((rows, _LENGTH), x.dtype),
        grid=grid,
        in_specs=[pl.BlockSpec((tr, cblk), lambda i: (i, 0))],
        out_specs=pl.BlockSpec((tr, _LENGTH), lambda i: (i, 0)),
        compiler_params=pltpu.CompilerParams(
            dimension_semantics=("parallel",)),
        cost_estimate=pl.CostEstimate(
            flops=0,
            transcendentals=0,
            bytes_accessed=rows * cblk * itemsize
            + rows * _LENGTH * itemsize,
        ),
    )(x)


def narrow_dim1_len2(x: jax.Array) -> jax.Array:
    """Equivalent of PyTorch `torch.narrow(x, dim=1, start=0, length=2)`."""
    rows, cols = x.shape
    assert cols >= _LENGTH, "narrow length exceeds dim 1 size"

    itemsize = jnp.dtype(x.dtype).itemsize
    cblk = cols if cols <= 128 else 128
    fetched_bytes = rows * cblk * itemsize

    # Fast path: for tiny inputs a plain XLA slice (pure DMA) strictly beats
    # any pallas_call (dispatch + ~0.35 us/step fixed cost dominates).
    if fetched_bytes < _FAST_PATH_BYTES:
        return x[:, 0:_LENGTH]

    return _narrow_dim1_len2_pallas(x)


if __name__ == "__main__":
    key = jax.random.PRNGKey(0)
    k_small, k_big = jax.random.split(key)

    # Small shape consistent with the module (rank-2 float32) — wrapper uses
    # the XLA fast path here.
    x_small = jax.random.normal(k_small, (8, 32), dtype=jnp.float32)
    out_small = narrow_dim1_len2(x_small)
    jax.block_until_ready(out_small)
    assert out_small.shape == (8, _LENGTH)
    assert jnp.allclose(out_small, x_small[:, 0:_LENGTH]), "small mismatch"

    # Larger (but still modest, ~4 MiB) input so the Pallas kernel itself is
    # exercised on TPU, including a partial last row tile and a 2-step grid.
    x_big = jax.random.normal(k_big, (4104, 256), dtype=jnp.float32)
    out_big = _narrow_dim1_len2_pallas(x_big)
    jax.block_until_ready(out_big)
    assert out_big.shape == (4104, _LENGTH)
    assert jnp.allclose(out_big, x_big[:, 0:_LENGTH]), "big mismatch"

    # Wrapper routing also dispatches the big input to the Pallas path.
    out_big2 = narrow_dim1_len2(x_big)
    jax.block_until_ready(out_big2)
    assert jnp.allclose(out_big2, x_big[:, 0:_LENGTH]), "wrapper mismatch"

    print("KERNEL_OK")
</pallas_src>

<mosaic_0001>
module attributes {stable_mosaic.version = 11 : i64} {
  func.func @_narrow_dim1_kernel(%arg0: i32, %arg1: memref<2056x128xf32, #tpu.memory_space<vmem>>, %arg2: memref<2056x2xf32, #tpu.memory_space<vmem>>) attributes {dimension_semantics = [#tpu.dimension_semantics<parallel>], iteration_bounds = array<i64: 2>, scalar_prefetch = 0 : i64, scratch_operands = 0 : i64, tpu.core_type = #tpu.core_type<tc>, window_params = [{transform_indices = @transform_0, window_bounds = array<i64: 2056, 128>}, {transform_indices = @transform_1, window_bounds = array<i64: 2056, 2>}]} {
    %c0 = arith.constant 0 : index
    %c0_0 = arith.constant 0 : index
    %0 = vector.load %arg1[%c0, %c0_0] : memref<2056x128xf32, #tpu.memory_space<vmem>>, vector<2056x2xf32>
    %c0_1 = arith.constant 0 : index
    %c0_2 = arith.constant 0 : index
    %1 = vector.load %arg2[%c0_1, %c0_2] : memref<2056x2xf32, #tpu.memory_space<vmem>>, vector<2056x2xf32>
    tpu.vector_store %arg2[%c0_1, %c0_2], %0 {strides = array<i32>} : memref<2056x2xf32, #tpu.memory_space<vmem>>, vector<2056x2xf32>,
    return
  }
  func.func @transform_0(%arg0: i32) -> (i32, i32) {
    %c0_i32 = arith.constant 0 : i32
    %c0_i32_0 = arith.constant 0 : i32
    return %arg0, %c0_i32 : i32, i32
  }
  func.func @transform_1(%arg0: i32) -> (i32, i32) {
    %c0_i32 = arith.constant 0 : i32
    %c0_i32_0 = arith.constant 0 : i32
    return %arg0, %c0_i32 : i32, i32
  }
}

</mosaic_0001>

<llo_original>
// kernel: tpu_custom_call.1
$region0: #{tpu_custom_call.1}
  #allocation0 [shape = 'u32[]', space=smem, size = 0x4, offset = 0x4, fixed_abs, tag = 'smem constant byte address 0x4 - core index']
  #allocation1 [shape = 'u32[72,128]{1,0:T(1,128)}', space=vmem, size = 0x9000, scoped, tag = 'internal scratch']
  %s0 = inlined_call_operand.hbm [shape: f32[4104,256], index: 0, kind: input, shape index: {}]
  %s1 = inlined_call_operand.vmem [shape: f32[4104,2], index: 1, kind: output, shape index: {}]
  %s2 = sld [smem:[#allocation0]]
  $region89: #{tpu_custom_call.1} parent=0
    _
  %s4 = ssub.s32 1, %s2
  %s5 = scalar_select 0, %s4, %s2
  $region1: #{tpu_custom_call.1} parent=0
    #allocation2 [shape = 'u8[2105344]{0}', space=vmem, size = 0x202000, scoped, tag = 'input window, operand 0']
    #allocation3 [shape = 's32[2]{0}', space=sflag, size = 0x8, scoped, tag = 'scoped memory for tpu_custom_call.1']
    #allocation4 [shape = 'u8[2105344]{0}', space=vmem, size = 0x202000, scoped, tag = 'output window, operand 0']
    %6 = vsyncpa [#allocation3], 0
    %s7 = scalar_lea.sflag [#allocation3], 1
    %8 = vsyncpa %s7, 0
    loop: start=0, step=1, limit=4
    $region2: #{tpu_custom_call.1} parent=1 // loop_pre_header
      _
    $region3: #{tpu_custom_call.1} parent=1 // loop_header
      %s10 = sphi 0, %s14
      %p11 = scmp.ge.s32.totalorder %s10, 4
      %s20 = sphi 0, %s22
      %s23 = sphi 0, %s20
      %s24 = sphi 0, %s23
      %s40 = sphi 0, %s24
      %s46 = sphi 0, %s48
      %s49 = sphi 0, %s46
      %s50 = sphi 0, %s49
      %s66 = sphi 0, %s50
    $region4: #{tpu_custom_call.1} parent=1 // loop_header_branch
      %13 = sbr.rel (%p11) target = $region8
    $region5: #{tpu_custom_call.1} parent=1 // loop_body
      %s15 = ssub.s32 %s10, 1
      %s16 = ssub.s32 %s10, 2
      %s17 = sadd.s32 %s10, 1
      %s18 = ssub.s32 %s10, %s17
      %p19 = scmp.eq.s32.totalorder %s18, 0
      %s21 = sadd.s32 %s20, 1
      %s22 = scalar_select %p19, %s20, %s21
      %p25 = pneg %p19
      %p26 = scmp.eq.s32.totalorder %s10, 1
      %p27 = por %p25, %p26
      %p28 = scmp.ne.s32.totalorder %s20, %s23
      %p29 = scmp.eq.s32.totalorder %s10, 0
      %p30 = por %p28, %p29
      %p31 = scmp.ne.s32.totalorder %s20, %s23
      %p32 = scmp.eq.s32.totalorder %s15, 1
      %p33 = por %p31, %p32
      %p34 = scmp.ne.s32.totalorder %s23, %s24
      %p35 = scmp.eq.s32.totalorder %s15, 0
      %p36 = por %p34, %p35
      %p37 = scmp.ne.s32.totalorder %s23, %s24
      %p38 = scmp.eq.s32.totalorder %s16, 1
      %p39 = por %p37, %p38
      %p41 = scmp.ne.s32.totalorder %s24, %s40
      %p42 = scmp.eq.s32.totalorder %s16, 0
      %p43 = por %p41, %p42
      %s44 = ssub.s32 %s10, %s17
      %p45 = scmp.eq.s32.totalorder %s44, 0
      %s47 = sadd.s32 %s46, 1
      %s48 = scalar_select %p45, %s46, %s47
      %p51 = pneg %p45
      %p52 = scmp.eq.s32.totalorder %s10, 1
      %p53 = por %p51, %p52
      %p54 = scmp.ne.s32.totalorder %s46, %s49
      %p55 = scmp.eq.s32.totalorder %s10, 0
      %p56 = por %p54, %p55
      %p57 = scmp.ne.s32.totalorder %s46, %s49
      %p58 = scmp.eq.s32.totalorder %s15, 1
      %p59 = por %p57, %p58
      %p60 = scmp.ne.s32.totalorder %s49, %s50
      %p61 = scmp.eq.s32.totalorder %s15, 0
      %p62 = por %p60, %p61
      %p63 = scmp.ne.s32.totalorder %s49, %s50
      %p64 = scmp.eq.s32.totalorder %s16, 1
      %p65 = por %p63, %p64
      %p67 = scmp.ne.s32.totalorder %s50, %s66
      %p68 = scmp.eq.s32.totalorder %s16, 0
      %p69 = por %p67, %p68
      %p70 = scmp.le.s32.totalorder 1, %s10
      %p71 = scmp.lt.s32.totalorder %s10, 3
      %p72 = pnand %p70, %p71
      %p73 = pneg %p72
      // Predicated region
      $region9: #{tpu_custom_call.1} parent=5 // pred_check
        _
      $region10: #{tpu_custom_call.1} parent=5 // pred_check_branch
        %75 = sbr.rel (%p72) target = $region12
      $region11: #{tpu_custom_call.1} parent=5 // pred_region
        %s76 = ssub.s32 %s10, 1
      $region12: #{tpu_custom_call.1} parent=5 // pred_fallthru
        _
      %p77 = scmp.lt.s32.totalorder %s10, 2
      // Predicated region
      $region13: #{tpu_custom_call.1} parent=5 // pred_check
        %p78 = pneg %p77
      $region14: #{tpu_custom_call.1} parent=5 // pred_check_branch
        %80 = sbr.rel (%p78) target = $region16
      $region15: #{tpu_custom_call.1} parent=5 // pred_region
        // Predicated region
        $region17: #{tpu_custom_call.1} parent=15 // pred_check
          %p81 = pneg %p30
        $region18: #{tpu_custom_call.1} parent=15 // pred_check_branch
          %83 = sbr.rel (%p81) target = $region20
        $region19: #{tpu_custom_call.1} parent=15 // pred_region
          %s84 = sand.u32 %s20, 1
          %s85 = scalar_lea.sflag [#allocation3], %s84
          %s86 = sand.u32 %s20, 1
          %s87 = smul.addr %s86, 2056
          %s88 = scalar_lea.vmem [#allocation2], %s87
          %s89 = smul.u32 257, %s10
          %s90 = ssub.s32 513, %s89
          %p91 = scmp.lt.s32.totalorder %s90, 257
          %s92 = scalar_select %p91, %s90, 257
          %s93 = smul.u32 8, %s92
          %s94 = ssub.s32 2056, %s93
          %s95 = sshll.u32 %s94, 4
          %96 = vsyncadd %s85, %s95
          %p97 = scmp.ne.s32.totalorder 0, %s93
          %s98 = smul.addr %s89, 2
          %s99 = smul.addr %s98, 8
          %s100 = scalar_lea.hbm %s0, %s99
          %s101 = smul.u32 8, %s92
          %s102 = sshll.u32 %s100, 4
          %s103 = int_to_ptr.hbm [resolvable:$true] %s102
          %s104 = sshll.u32 %s88, 4
          %s105 = int_to_ptr.vmem [resolvable:$true] %s104
          %s106 = sshll.u32 %s101, 4
          %110 = dma.hbm_to_vmem [thread:$0]  (%p97), %s103, %s106, %s105, %s85, 256, 128, 8
        $region20: #{tpu_custom_call.1} parent=15 // pred_fallthru
          _
      $region16: #{tpu_custom_call.1} parent=5 // pred_fallthru
        _
      %p111 = scmp.le.s32.totalorder 1, %s10
      %p112 = scmp.lt.s32.totalorder %s10, 3
      %p113 = pnand %p111, %p112
      %p114 = pneg %p113
      // Predicated region
      $region21: #{tpu_custom_call.1} parent=5 // pred_check
        _
      $region22: #{tpu_custom_call.1} parent=5 // pred_check_branch
        %116 = sbr.rel (%p113) target = $region24
      $region23: #{tpu_custom_call.1} parent=5 // pred_region
        %s117 = ssub.s32 %s10, 1
        %s118 = sand.u32 %s23, 1
        %s119 = scalar_lea.sflag [#allocation3], %s118
        %s120 = sand.u32 %s23, 1
        %s121 = smul.addr %s120, 2056
        %s122 = scalar_lea.vmem [#allocation2], %s121
        // Predicated region
        $region25: #{tpu_custom_call.1} parent=23 // pred_check
          %p123 = pneg %p36
        $region26: #{tpu_custom_call.1} parent=23 // pred_check_branch
          %125 = sbr.rel (%p123) target = $region28
        $region27: #{tpu_custom_call.1} parent=23 // pred_region
          %127 = dma.done %s119, 32896
        $region28: #{tpu_custom_call.1} parent=23 // pred_fallthru
          _
        %s128 = sand.u32 %s23, 1
        %s129 = scalar_lea.sflag [#allocation3], %s128
        %s130 = sand.u32 %s23, 1
        %s131 = smul.addr %s130, 2056
        %s132 = scalar_lea.vmem [#allocation2], %s131
        %p133 = pneg %p36
        %p134 = pneg %p33
        %p135 = pneg %p62
        %p136 = pneg %p59
        %s137 = sand.u32 %s49, 1
        %s138 = sand.u32 %s49, 1
        %s139 = smul.addr %s138, 2056
        %s140 = scalar_lea.vmem [#allocation4], %s139
        %s141 = smul.u32 257, %s15
        %s142 = ssub.s32 513, %s141
        %p143 = scmp.lt.s32.totalorder %s142, 257
        %s144 = scalar_select %p143, %s142, 257
        %s145 = smul.u32 8, %s144
        %s146 = smul.u32 257, %s15
        %s147 = ssub.s32 513, %s146
        %p148 = scmp.lt.s32.totalorder %s147, 257
        %s149 = scalar_select %p148, %s147, 257
        %s150 = smul.u32 8, %s149
        %v151 = vld [vmem:[%s122] sm:$0xff]
        %v152 = vld [vmem:[%s122 + $0x8] sm:$0xff]
        %v153 = vld [vmem:[%s122 + $0x10] sm:$0xff]
        %v154 = vld [vmem:[%s122 + $0x18] sm:$0xff]
        %v155 = vld [vmem:[%s122 + $0x20] sm:$0xff]
        %v156 = vld [vmem:[%s122 + $0x28] sm:$0xff]
        %v157 = vld [vmem:[%s122 + $0x30] sm:$0xff]
        %v158 = vld [vmem:[%s122 + $0x38] sm:$0xff]
        %v159 = vld [vmem:[%s122 + $0x40] sm:$0xff]
        %v160 = vld [vmem:[%s122 + $0x48] sm:$0xff]
        %v161 = vld [vmem:[%s122 + $0x50] sm:$0xff]
        %v162 = vld [vmem:[%s122 + $0x58] sm:$0xff]
        %v163 = vld [vmem:[%s122 + $0x60] sm:$0xff]
        %v164 = vld [vmem:[%s122 + $0x68] sm:$0xff]
        %v165 = vld [vmem:[%s122 + $0x70] sm:$0xff]
        %v166 = vld [vmem:[%s122 + $0x78] sm:$0xff]
        %v167 = vld [vmem:[%s122 + $0x80] sm:$0xff]
        %v168 = vld [vmem:[%s122 + $0x88] sm:$0xff]
        %v169 = vld [vmem:[%s122 + $0x90] sm:$0xff]
        %v170 = vld [vmem:[%s122 + $0x98] sm:$0xff]
        %v171 = vld [vmem:[%s122 + $0xa0] sm:$0xff]
        %v172 = vld [vmem:[%s122 + $0xa8] sm:$0xff]
        %v173 = vld [vmem:[%s122 + $0xb0] sm:$0xff]
        %v174 = vld [vmem:[%s122 + $0xb8] sm:$0xff]
        %v175 = vld [vmem:[%s122 + $0xc0] sm:$0xff]
        %v176 = vld [vmem:[%s122 + $0xc8] sm:$0xff]
        %v177 = vld [vmem:[%s122 + $0xd0] sm:$0xff]
        %v178 = vld [vmem:[%s122 + $0xd8] sm:$0xff]
        %v179 = vld [vmem:[%s122 + $0xe0] sm:$0xff]
        %v180 = vld [vmem:[%s122 + $0xe8] sm:$0xff]
        %v181 = vld [vmem:[%s122 + $0xf0] sm:$0xff]
        %v182 = vld [vmem:[%s122 + $0xf8] sm:$0xff]
        %v183 = vld [vmem:[%s122 + $0x100] sm:$0xff]
        %v184 = vld [vmem:[%s122 + $0x108] sm:$0xff]
        %v185 = vld [vmem:[%s122 + $0x110] sm:$0xff]
        %v186 = vld [vmem:[%s122 + $0x118] sm:$0xff]
        %v187 = vld [vmem:[%s122 + $0x120] sm:$0xff]
        %v188 = vld [vmem:[%s122 + $0x128] sm:$0xff]
        %v189 = vld [vmem:[%s122 + $0x130] sm:$0xff]
        %v190 = vld [vmem:[%s122 + $0x138] sm:$0xff]
        %v191 = vld [vmem:[%s122 + $0x140] sm:$0xff]
        %v192 = vld [vmem:[%s122 + $0x148] sm:$0xff]
        %v193 = vld [vmem:[%s122 + $0x150] sm:$0xff]
        %v194 = vld [vmem:[%s122 + $0x158] sm:$0xff]
        %v195 = vld [vmem:[%s122 + $0x160] sm:$0xff]
        %v196 = vld [vmem:[%s122 + $0x168] sm:$0xff]
        %v197 = vld [vmem:[%s122 + $0x170] sm:$0xff]
        %v198 = vld [vmem:[%s122 + $0x178] sm:$0xff]
        %v199 = vld [vmem:[%s122 + $0x180] sm:$0xff]
        %v200 = vld [vmem:[%s122 + $0x188] sm:$0xff]
        %v201 = vld [vmem:[%s122 + $0x190] sm:$0xff]
        %v202 = vld [vmem:[%s122 + $0x198] sm:$0xff]
        %v203 = vld [vmem:[%s122 + $0x1a0] sm:$0xff]
        %v204 = vld [vmem:[%s122 + $0x1a8] sm:$0xff]
        %v205 = vld [vmem:[%s122 + $0x1b0] sm:$0xff]
        %v206 = vld [vmem:[%s122 + $0x1b8] sm:$0xff]
        %v207 = vld [vmem:[%s122 + $0x1c0] sm:$0xff]
        %v208 = vld [vmem:[%s122 + $0x1c8] sm:$0xff]
        %v209 = vld [vmem:[%s122 + $0x1d0] sm:$0xff]
        %v210 = vld [vmem:[%s122 + $0x1d8] sm:$0xff]
        %v211 = vld [vmem:[%s122 + $0x1e0] sm:$0xff]
        %v212 = vld [vmem:[%s122 + $0x1e8] sm:$0xff]
        %v213 = vld [vmem:[%s122 + $0x1f0] sm:$0xff]
        %v214 = vld [vmem:[%s122 + $0x1f8] sm:$0xff]
        %v215 = vld [vmem:[%s122 + $0x200] sm:$0xff]
        %v216 = vld [vmem:[%s122 + $0x208] sm:$0xff]
        %v217 = vld [vmem:[%s122 + $0x210] sm:$0xff]
        %v218 = vld [vmem:[%s122 + $0x218] sm:$0xff]
        %v219 = vld [vmem:[%s122 + $0x220] sm:$0xff]
        %v220 = vld [vmem:[%s122 + $0x228] sm:$0xff]
        %v221 = vld [vmem:[%s122 + $0x230] sm:$0xff]
        %v222 = vld [vmem:[%s122 + $0x238] sm:$0xff]
        %v223 = vld [vmem:[%s122 + $0x240] sm:$0xff]
        %v224 = vld [vmem:[%s122 + $0x248] sm:$0xff]
        %v225 = vld [vmem:[%s122 + $0x250] sm:$0xff]
        %v226 = vld [vmem:[%s122 + $0x258] sm:$0xff]
        %v227 = vld [vmem:[%s122 + $0x260] sm:$0xff]
        %v228 = vld [vmem:[%s122 + $0x268] sm:$0xff]
        %v229 = vld [vmem:[%s122 + $0x270] sm:$0xff]
        %v230 = vld [vmem:[%s122 + $0x278] sm:$0xff]
        %v231 = vld [vmem:[%s122 + $0x280] sm:$0xff]
        %v232 = vld [vmem:[%s122 + $0x288] sm:$0xff]
        %v233 = vld [vmem:[%s122 + $0x290] sm:$0xff]
        %v234 = vld [vmem:[%s122 + $0x298] sm:$0xff]
        %v235 = vld [vmem:[%s122 + $0x2a0] sm:$0xff]
        %v236 = vld [vmem:[%s122 + $0x2a8] sm:$0xff]
        %v237 = vld [vmem:[%s122 + $0x2b0] sm:$0xff]
        %v238 = vld [vmem:[%s122 + $0x2b8] sm:$0xff]
        %v239 = vld [vmem:[%s122 + $0x2c0] sm:$0xff]
        %v240 = vld [vmem:[%s122 + $0x2c8] sm:$0xff]
        %v241 = vld [vmem:[%s122 + $0x2d0] sm:$0xff]
        %v242 = vld [vmem:[%s122 + $0x2d8] sm:$0xff]
        %v243 = vld [vmem:[%s122 + $0x2e0] sm:$0xff]
        %v244 = vld [vmem:[%s122 + $0x2e8] sm:$0xff]
        %v245 = vld [vmem:[%s122 + $0x2f0] sm:$0xff]
        %v246 = vld [vmem:[%s122 + $0x2f8] sm:$0xff]
        %v247 = vld [vmem:[%s122 + $0x300] sm:$0xff]
        %v248 = vld [vmem:[%s122 + $0x308] sm:$0xff]
        %v249 = vld [vmem:[%s122 + $0x310] sm:$0xff]
        %v250 = vld [vmem:[%s122 + $0x318] sm:$0xff]
        %v251 = vld [vmem:[%s122 + $0x320] sm:$0xff]
        %v252 = vld [vmem:[%s122 + $0x328] sm:$0xff]
        %v253 = vld [vmem:[%s122 + $0x330] sm:$0xff]
        %v254 = vld [vmem:[%s122 + $0x338] sm:$0xff]
        %v255 = vld [vmem:[%s122 + $0x340] sm:$0xff]
        %v256 = vld [vmem:[%s122 + $0x348] sm:$0xff]
        %v257 = vld [vmem:[%s122 + $0x350] sm:$0xff]
        %v258 = vld [vmem:[%s122 + $0x358] sm:$0xff]
        %v259 = vld [vmem:[%s122 + $0x360] sm:$0xff]
        %v260 = vld [vmem:[%s122 + $0x368] sm:$0xff]
        %v261 = vld [vmem:[%s122 + $0x370] sm:$0xff]
        %v262 = vld [vmem:[%s122 + $0x378] sm:$0xff]
        %v263 = vld [vmem:[%s122 + $0x380] sm:$0xff]
        %v264 = vld [vmem:[%s122 + $0x388] sm:$0xff]
        %v265 = vld [vmem:[%s122 + $0x390] sm:$0xff]
        %v266 = vld [vmem:[%s122 + $0x398] sm:$0xff]
        %v267 = vld [vmem:[%s122 + $0x3a0] sm:$0xff]
        %v268 = vld [vmem:[%s122 + $0x3a8] sm:$0xff]
        %v269 = vld [vmem:[%s122 + $0x3b0] sm:$0xff]
        %v270 = vld [vmem:[%s122 + $0x3b8] sm:$0xff]
        %v271 = vld [vmem:[%s122 + $0x3c0] sm:$0xff]
        %v272 = vld [vmem:[%s122 + $0x3c8] sm:$0xff]
        %v273 = vld [vmem:[%s122 + $0x3d0] sm:$0xff]
        %v274 = vld [vmem:[%s122 + $0x3d8] sm:$0xff]
        %v275 = vld [vmem:[%s122 + $0x3e0] sm:$0xff]
        %v276 = vld [vmem:[%s122 + $0x3e8] sm:$0xff]
        %v277 = vld [vmem:[%s122 + $0x3f0] sm:$0xff]
        %v278 = vld [vmem:[%s122 + $0x3f8] sm:$0xff]
        %v279 = vld [vmem:[%s122 + $0x400] sm:$0xff]
        %v280 = vld [vmem:[%s122 + $0x408] sm:$0xff]
        %v281 = vld [vmem:[%s122 + $0x410] sm:$0xff]
        %v282 = vld [vmem:[%s122 + $0x418] sm:$0xff]
        %v283 = vld [vmem:[%s122 + $0x420] sm:$0xff]
        %v284 = vld [vmem:[%s122 + $0x428] sm:$0xff]
        %v285 = vld [vmem:[%s122 + $0x430] sm:$0xff]
        %v286 = vld [vmem:[%s122 + $0x438] sm:$0xff]
        %v287 = vld [vmem:[%s122 + $0x440] sm:$0xff]
        %v288 = vld [vmem:[%s122 + $0x448] sm:$0xff]
        %v289 = vld [vmem:[%s122 + $0x450] sm:$0xff]
        %v290 = vld [vmem:[%s122 + $0x458] sm:$0xff]
        %v291 = vld [vmem:[%s122 + $0x460] sm:$0xff]
        %v292 = vld [vmem:[%s122 + $0x468] sm:$0xff]
        %v293 = vld [vmem:[%s122 + $0x470] sm:$0xff]
        %v294 = vld [vmem:[%s122 + $0x478] sm:$0xff]
        %v295 = vld [vmem:[%s122 + $0x480] sm:$0xff]
        %v296 = vld [vmem:[%s122 + $0x488] sm:$0xff]
        %v297 = vld [vmem:[%s122 + $0x490] sm:$0xff]
        %v298 = vld [vmem:[%s122 + $0x498] sm:$0xff]
        %v299 = vld [vmem:[%s122 + $0x4a0] sm:$0xff]
        %v300 = vld [vmem:[%s122 + $0x4a8] sm:$0xff]
        %v301 = vld [vmem:[%s122 + $0x4b0] sm:$0xff]
        %v302 = vld [vmem:[%s122 + $0x4b8] sm:$0xff]
        %v303 = vld [vmem:[%s122 + $0x4c0] sm:$0xff]
        %v304 = vld [vmem:[%s122 + $0x4c8] sm:$0xff]
        %v305 = vld [vmem:[%s122 + $0x4d0] sm:$0xff]
        %v306 = vld [vmem:[%s122 + $0x4d8] sm:$0xff]
        %v307 = vld [vmem:[%s122 + $0x4e0] sm:$0xff]
        %v308 = vld [vmem:[%s122 + $0x4e8] sm:$0xff]
        %v309 = vld [vmem:[%s122 + $0x4f0] sm:$0xff]
        %v310 = vld [vmem:[%s122 + $0x4f8] sm:$0xff]
        %v311 = vld [vmem:[%s122 + $0x500] sm:$0xff]
        %v312 = vld [vmem:[%s122 + $0x508] sm:$0xff]
        %v313 = vld [vmem:[%s122 + $0x510] sm:$0xff]
        %v314 = vld [vmem:[%s122 + $0x518] sm:$0xff]
        %v315 = vld [vmem:[%s122 + $0x520] sm:$0xff]
        %v316 = vld [vmem:[%s122 + $0x528] sm:$0xff]
        %v317 = vld [vmem:[%s122 + $0x530] sm:$0xff]
        %v318 = vld [vmem:[%s122 + $0x538] sm:$0xff]
        %v319 = vld [vmem:[%s122 + $0x540] sm:$0xff]
        %v320 = vld [vmem:[%s122 + $0x548] sm:$0xff]
        %v321 = vld [vmem:[%s122 + $0x550] sm:$0xff]
        %v322 = vld [vmem:[%s122 + $0x558] sm:$0xff]
        %v323 = vld [vmem:[%s122 + $0x560] sm:$0xff]
        %v324 = vld [vmem:[%s122 + $0x568] sm:$0xff]
        %v325 = vld [vmem:[%s122 + $0x570] sm:$0xff]
        %v326 = vld [vmem:[%s122 + $0x578] sm:$0xff]
        %v327 = vld [vmem:[%s122 + $0x580] sm:$0xff]
        %v328 = vld [vmem:[%s122 + $0x588] sm:$0xff]
        %v329 = vld [vmem:[%s122 + $0x590] sm:$0xff]
        %v330 = vld [vmem:[%s122 + $0x598] sm:$0xff]
        %v331 = vld [vmem:[%s122 + $0x5a0] sm:$0xff]
        %v332 = vld [vmem:[%s122 + $0x5a8] sm:$0xff]
        %v333 = vld [vmem:[%s122 + $0x5b0] sm:$0xff]
        %v334 = vld [vmem:[%s122 + $0x5b8] sm:$0xff]
        %v335 = vld [vmem:[%s122 + $0x5c0] sm:$0xff]
        %v336 = vld [vmem:[%s122 + $0x5c8] sm:$0xff]
        %v337 = vld [vmem:[%s122 + $0x5d0] sm:$0xff]
        %v338 = vld [vmem:[%s122 + $0x5d8] sm:$0xff]
        %v339 = vld [vmem:[%s122 + $0x5e0] sm:$0xff]
        %v340 = vld [vmem:[%s122 + $0x5e8] sm:$0xff]
        %v341 = vld [vmem:[%s122 + $0x5f0] sm:$0xff]
        %v342 = vld [vmem:[%s122 + $0x5f8] sm:$0xff]
        %v343 = vld [vmem:[%s122 + $0x600] sm:$0xff]
        %v344 = vld [vmem:[%s122 + $0x608] sm:$0xff]
        %v345 = vld [vmem:[%s122 + $0x610] sm:$0xff]
        %v346 = vld [vmem:[%s122 + $0x618] sm:$0xff]
        %v347 = vld [vmem:[%s122 + $0x620] sm:$0xff]
        %v348 = vld [vmem:[%s122 + $0x628] sm:$0xff]
        %v349 = vld [vmem:[%s122 + $0x630] sm:$0xff]
        %v350 = vld [vmem:[%s122 + $0x638] sm:$0xff]
        %v351 = vld [vmem:[%s122 + $0x640] sm:$0xff]
        %v352 = vld [vmem:[%s122 + $0x648] sm:$0xff]
        %v353 = vld [vmem:[%s122 + $0x650] sm:$0xff]
        %v354 = vld [vmem:[%s122 + $0x658] sm:$0xff]
        %v355 = vld [vmem:[%s122 + $0x660] sm:$0xff]
        %v356 = vld [vmem:[%s122 + $0x668] sm:$0xff]
        %v357 = vld [vmem:[%s122 + $0x670] sm:$0xff]
        %v358 = vld [vmem:[%s122 + $0x678] sm:$0xff]
        %v359 = vld [vmem:[%s122 + $0x680] sm:$0xff]
        %v360 = vld [vmem:[%s122 + $0x688] sm:$0xff]
        %v361 = vld [vmem:[%s122 + $0x690] sm:$0xff]
        %v362 = vld [vmem:[%s122 + $0x698] sm:$0xff]
        %v363 = vld [vmem:[%s122 + $0x6a0] sm:$0xff]
        %v364 = vld [vmem:[%s122 + $0x6a8] sm:$0xff]
        %v365 = vld [vmem:[%s122 + $0x6b0] sm:$0xff]
        %v366 = vld [vmem:[%s122 + $0x6b8] sm:$0xff]
        %v367 = vld [vmem:[%s122 + $0x6c0] sm:$0xff]
        %v368 = vld [vmem:[%s122 + $0x6c8] sm:$0xff]
        %v369 = vld [vmem:[%s122 + $0x6d0] sm:$0xff]
        %v370 = vld [vmem:[%s122 + $0x6d8] sm:$0xff]
        %v371 = vld [vmem:[%s122 + $0x6e0] sm:$0xff]
        %v372 = vld [vmem:[%s122 + $0x6e8] sm:$0xff]
        %v373 = vld [vmem:[%s122 + $0x6f0] sm:$0xff]
        %v374 = vld [vmem:[%s122 + $0x6f8] sm:$0xff]
        %v375 = vld [vmem:[%s122 + $0x700] sm:$0xff]
        %v376 = vld [vmem:[%s122 + $0x708] sm:$0xff]
        %v377 = vld [vmem:[%s122 + $0x710] sm:$0xff]
        %v378 = vld [vmem:[%s122 + $0x718] sm:$0xff]
        %v379 = vld [vmem:[%s122 + $0x720] sm:$0xff]
        %v380 = vld [vmem:[%s122 + $0x728] sm:$0xff]
        %v381 = vld [vmem:[%s122 + $0x730] sm:$0xff]
        %v382 = vld [vmem:[%s122 + $0x738] sm:$0xff]
        %v383 = vld [vmem:[%s122 + $0x740] sm:$0xff]
        %v384 = vld [vmem:[%s122 + $0x748] sm:$0xff]
        %v385 = vld [vmem:[%s122 + $0x750] sm:$0xff]
        %v386 = vld [vmem:[%s122 + $0x758] sm:$0xff]
        %v387 = vld [vmem:[%s122 + $0x760] sm:$0xff]
        %v388 = vld [vmem:[%s122 + $0x768] sm:$0xff]
        %v389 = vld [vmem:[%s122 + $0x770] sm:$0xff]
        %v390 = vld [vmem:[%s122 + $0x778] sm:$0xff]
        %v391 = vld [vmem:[%s122 + $0x780] sm:$0xff]
        %v392 = vld [vmem:[%s122 + $0x788] sm:$0xff]
        %v393 = vld [vmem:[%s122 + $0x790] sm:$0xff]
        %v394 = vld [vmem:[%s122 + $0x798] sm:$0xff]
        %v395 = vld [vmem:[%s122 + $0x7a0] sm:$0xff]
        %v396 = vld [vmem:[%s122 + $0x7a8] sm:$0xff]
        %v397 = vld [vmem:[%s122 + $0x7b0] sm:$0xff]
        %v398 = vld [vmem:[%s122 + $0x7b8] sm:$0xff]
        %v399 = vld [vmem:[%s122 + $0x7c0] sm:$0xff]
        %v400 = vld [vmem:[%s122 + $0x7c8] sm:$0xff]
        %v401 = vld [vmem:[%s122 + $0x7d0] sm:$0xff]
        %v402 = vld [vmem:[%s122 + $0x7d8] sm:$0xff]
        %v403 = vld [vmem:[%s122 + $0x7e0] sm:$0xff]
        %v404 = vld [vmem:[%s122 + $0x7e8] sm:$0xff]
        %v405 = vld [vmem:[%s122 + $0x7f0] sm:$0xff]
        %v406 = vld [vmem:[%s122 + $0x7f8] sm:$0xff]
        %v407 = vld [vmem:[%s122 + $0x800] sm:$0xff]
        %vm408 = vcmask 15360
        %409 = vst.msk [vmem:[%s140] sm:$0xff] %vm408, %v151
        %410 = vst.msk [vmem:[%s140 + $0x8] sm:$0xff] %vm408, %v152
        %411 = vst.msk [vmem:[%s140 + $0x10] sm:$0xff] %vm408, %v153
        %412 = vst.msk [vmem:[%s140 + $0x18] sm:$0xff] %vm408, %v154
        %413 = vst.msk [vmem:[%s140 + $0x20] sm:$0xff] %vm408, %v155
        %414 = vst.msk [vmem:[%s140 + $0x28] sm:$0xff] %vm408, %v156
        %415 = vst.msk [vmem:[%s140 + $0x30] sm:$0xff] %vm408, %v157
        %416 = vst.msk [vmem:[%s140 + $0x38] sm:$0xff] %vm408, %v158
        %417 = vst.msk [vmem:[%s140 + $0x40] sm:$0xff] %vm408, %v159
        %418 = vst.msk [vmem:[%s140 + $0x48] sm:$0xff] %vm408, %v160
        %419 = vst.msk [vmem:[%s140 + $0x50] sm:$0xff] %vm408, %v161
        %420 = vst.msk [vmem:[%s140 + $0x58] sm:$0xff] %vm408, %v162
        %421 = vst.msk [vmem:[%s140 + $0x60] sm:$0xff] %vm408, %v163
        %422 = vst.msk [vmem:[%s140 + $0x68] sm:$0xff] %vm408, %v164
        %423 = vst.msk [vmem:[%s140 + $0x70] sm:$0xff] %vm408, %v165
        %424 = vst.msk [vmem:[%s140 + $0x78] sm:$0xff] %vm408, %v166
        %425 = vst.msk [vmem:[%s140 + $0x80] sm:$0xff] %vm408, %v167
        %426 = vst.msk [vmem:[%s140 + $0x88] sm:$0xff] %vm408, %v168
        %427 = vst.msk [vmem:[%s140 + $0x90] sm:$0xff] %vm408, %v169
        %428 = vst.msk [vmem:[%s140 + $0x98] sm:$0xff] %vm408, %v170
        %429 = vst.msk [vmem:[%s140 + $0xa0] sm:$0xff] %vm408, %v171
        %430 = vst.msk [vmem:[%s140 + $0xa8] sm:$0xff] %vm408, %v172
        %431 = vst.msk [vmem:[%s140 + $0xb0] sm:$0xff] %vm408, %v173
        %432 = vst.msk [vmem:[%s140 + $0xb8] sm:$0xff] %vm408, %v174
        %433 = vst.msk [vmem:[%s140 + $0xc0] sm:$0xff] %vm408, %v175
        %434 = vst.msk [vmem:[%s140 + $0xc8] sm:$0xff] %vm408, %v176
        %435 = vst.msk [vmem:[%s140 + $0xd0] sm:$0xff] %vm408, %v177
        %436 = vst.msk [vmem:[%s140 + $0xd8] sm:$0xff] %vm408, %v178
        %437 = vst.msk [vmem:[%s140 + $0xe0] sm:$0xff] %vm408, %v179
        %438 = vst.msk [vmem:[%s140 + $0xe8] sm:$0xff] %vm408, %v180
        %439 = vst.msk [vmem:[%s140 + $0xf0] sm:$0xff] %vm408, %v181
        %440 = vst.msk [vmem:[%s140 + $0xf8] sm:$0xff] %vm408, %v182
        %441 = vst.msk [vmem:[%s140 + $0x100] sm:$0xff] %vm408, %v183
        %442 = vst.msk [vmem:[%s140 + $0x108] sm:$0xff] %vm408, %v184
        %443 = vst.msk [vmem:[%s140 + $0x110] sm:$0xff] %vm408, %v185
        %444 = vst.msk [vmem:[%s140 + $0x118] sm:$0xff] %vm408, %v186
        %445 = vst.msk [vmem:[%s140 + $0x120] sm:$0xff] %vm408, %v187
        %446 = vst.msk [vmem:[%s140 + $0x128] sm:$0xff] %vm408, %v188
        %447 = vst.msk [vmem:[%s140 + $0x130] sm:$0xff] %vm408, %v189
        %448 = vst.msk [vmem:[%s140 + $0x138] sm:$0xff] %vm408, %v190
        %449 = vst.msk [vmem:[%s140 + $0x140] sm:$0xff] %vm408, %v191
        %450 = vst.msk [vmem:[%s140 + $0x148] sm:$0xff] %vm408, %v192
        %451 = vst.msk [vmem:[%s140 + $0x150] sm:$0xff] %vm408, %v193
        %452 = vst.msk [vmem:[%s140 + $0x158] sm:$0xff] %vm408, %v194
        %453 = vst.msk [vmem:[%s140 + $0x160] sm:$0xff] %vm408, %v195
        %454 = vst.msk [vmem:[%s140 + $0x168] sm:$0xff] %vm408, %v196
        %455 = vst.msk [vmem:[%s140 + $0x170] sm:$0xff] %vm408, %v197
        %456 = vst.msk [vmem:[%s140 + $0x178] sm:$0xff] %vm408, %v198
        %457 = vst.msk [vmem:[%s140 + $0x180] sm:$0xff] %vm408, %v199
        %458 = vst.msk [vmem:[%s140 + $0x188] sm:$0xff] %vm408, %v200
        %459 = vst.msk [vmem:[%s140 + $0x190] sm:$0xff] %vm408, %v201
        %460 = vst.msk [vmem:[%s140 + $0x198] sm:$0xff] %vm408, %v202
        %461 = vst.msk [vmem:[%s140 + $0x1a0] sm:$0xff] %vm408, %v203
        %462 = vst.msk [vmem:[%s140 + $0x1a8] sm:$0xff] %vm408, %v204
        %463 = vst.msk [vmem:[%s140 + $0x1b0] sm:$0xff] %vm408, %v205
        %464 = vst.msk [vmem:[%s140 + $0x1b8] sm:$0xff] %vm408, %v206
        %465 = vst.msk [vmem:[%s140 + $0x1c0] sm:$0xff] %vm408, %v207
        %466 = vst.msk [vmem:[%s140 + $0x1c8] sm:$0xff] %vm408, %v208
        %467 = vst.msk [vmem:[%s140 + $0x1d0] sm:$0xff] %vm408, %v209
        %468 = vst.msk [vmem:[%s140 + $0x1d8] sm:$0xff] %vm408, %v210
        %469 = vst.msk [vmem:[%s140 + $0x1e0] sm:$0xff] %vm408, %v211
        %470 = vst.msk [vmem:[%s140 + $0x1e8] sm:$0xff] %vm408, %v212
        %471 = vst.msk [vmem:[%s140 + $0x1f0] sm:$0xff] %vm408, %v213
        %472 = vst.msk [vmem:[%s140 + $0x1f8] sm:$0xff] %vm408, %v214
        %473 = vst.msk [vmem:[%s140 + $0x200] sm:$0xff] %vm408, %v215
        %474 = vst.msk [vmem:[%s140 + $0x208] sm:$0xff] %vm408, %v216
        %475 = vst.msk [vmem:[%s140 + $0x210] sm:$0xff] %vm408, %v217
        %476 = vst.msk [vmem:[%s140 + $0x218] sm:$0xff] %vm408, %v218
        %477 = vst.msk [vmem:[%s140 + $0x220] sm:$0xff] %vm408, %v219
        %478 = vst.msk [vmem:[%s140 + $0x228] sm:$0xff] %vm408, %v220
        %479 = vst.msk [vmem:[%s140 + $0x230] sm:$0xff] %vm408, %v221
        %480 = vst.msk [vmem:[%s140 + $0x238] sm:$0xff] %vm408, %v222
        %481 = vst.msk [vmem:[%s140 + $0x240] sm:$0xff] %vm408, %v223
        %482 = vst.msk [vmem:[%s140 + $0x248] sm:$0xff] %vm408, %v224
        %483 = vst.msk [vmem:[%s140 + $0x250] sm:$0xff] %vm408, %v225
        %484 = vst.msk [vmem:[%s140 + $0x258] sm:$0xff] %vm408, %v226
        %485 = vst.msk [vmem:[%s140 + $0x260] sm:$0xff] %vm408, %v227
        %486 = vst.msk [vmem:[%s140 + $0x268] sm:$0xff] %vm408, %v228
        %487 = vst.msk [vmem:[%s140 + $0x270] sm:$0xff] %vm408, %v229
        %488 = vst.msk [vmem:[%s140 + $0x278] sm:$0xff] %vm408, %v230
        %489 = vst.msk [vmem:[%s140 + $0x280] sm:$0xff] %vm408, %v231
        %490 = vst.msk [vmem:[%s140 + $0x288] sm:$0xff] %vm408, %v232
        %491 = vst.msk [vmem:[%s140 + $0x290] sm:$0xff] %vm408, %v233
        %492 = vst.msk [vmem:[%s140 + $0x298] sm:$0xff] %vm408, %v234
        %493 = vst.msk [vmem:[%s140 + $0x2a0] sm:$0xff] %vm408, %v235
        %494 = vst.msk [vmem:[%s140 + $0x2a8] sm:$0xff] %vm408, %v236
        %495 = vst.msk [vmem:[%s140 + $0x2b0] sm:$0xff] %vm408, %v237
        %496 = vst.msk [vmem:[%s140 + $0x2b8] sm:$0xff] %vm408, %v238
        %497 = vst.msk [vmem:[%s140 + $0x2c0] sm:$0xff] %vm408, %v239
        %498 = vst.msk [vmem:[%s140 + $0x2c8] sm:$0xff] %vm408, %v240
        %499 = vst.msk [vmem:[%s140 + $0x2d0] sm:$0xff] %vm408, %v241
        %500 = vst.msk [vmem:[%s140 + $0x2d8] sm:$0xff] %vm408, %v242
        %501 = vst.msk [vmem:[%s140 + $0x2e0] sm:$0xff] %vm408, %v243
        %502 = vst.msk [vmem:[%s140 + $0x2e8] sm:$0xff] %vm408, %v244
        %503 = vst.msk [vmem:[%s140 + $0x2f0] sm:$0xff] %vm408, %v245
        %504 = vst.msk [vmem:[%s140 + $0x2f8] sm:$0xff] %vm408, %v246
        %505 = vst.msk [vmem:[%s140 + $0x300] sm:$0xff] %vm408, %v247
        %506 = vst.msk [vmem:[%s140 + $0x308] sm:$0xff] %vm408, %v248
        %507 = vst.msk [vmem:[%s140 + $0x310] sm:$0xff] %vm408, %v249
        %508 = vst.msk [vmem:[%s140 + $0x318] sm:$0xff] %vm408, %v250
        %509 = vst.msk [vmem:[%s140 + $0x320] sm:$0xff] %vm408, %v251
        %510 = vst.msk [vmem:[%s140 + $0x328] sm:$0xff] %vm408, %v252
        %511 = vst.msk [vmem:[%s140 + $0x330] sm:$0xff] %vm408, %v253
        %512 = vst.msk [vmem:[%s140 + $0x338] sm:$0xff] %vm408, %v254
        %513 = vst.msk [vmem:[%s140 + $0x340] sm:$0xff] %vm408, %v255
        %514 = vst.msk [vmem:[%s140 + $0x348] sm:$0xff] %vm408, %v256
        %515 = vst.msk [vmem:[%s140 + $0x350] sm:$0xff] %vm408, %v257
        %516 = vst.msk [vmem:[%s140 + $0x358] sm:$0xff] %vm408, %v258
        %517 = vst.msk [vmem:[%s140 + $0x360] sm:$0xff] %vm408, %v259
        %518 = vst.msk [vmem:[%s140 + $0x368] sm:$0xff] %vm408, %v260
        %519 = vst.msk [vmem:[%s140 + $0x370] sm:$0xff] %vm408, %v261
        %520 = vst.msk [vmem:[%s140 + $0x378] sm:$0xff] %vm408, %v262
        %521 = vst.msk [vmem:[%s140 + $0x380] sm:$0xff] %vm408, %v263
        %522 = vst.msk [vmem:[%s140 + $0x388] sm:$0xff] %vm408, %v264
        %523 = vst.msk [vmem:[%s140 + $0x390] sm:$0xff] %vm408, %v265
        %524 = vst.msk [vmem:[%s140 + $0x398] sm:$0xff] %vm408, %v266
        %525 = vst.msk [vmem:[%s140 + $0x3a0] sm:$0xff] %vm408, %v267
        %526 = vst.msk [vmem:[%s140 + $0x3a8] sm:$0xff] %vm408, %v268
        %527 = vst.msk [vmem:[%s140 + $0x3b0] sm:$0xff] %vm408, %v269
        %528 = vst.msk [vmem:[%s140 + $0x3b8] sm:$0xff] %vm408, %v270
        %529 = vst.msk [vmem:[%s140 + $0x3c0] sm:$0xff] %vm408, %v271
        %530 = vst.msk [vmem:[%s140 + $0x3c8] sm:$0xff] %vm408, %v272
        %531 = vst.msk [vmem:[%s140 + $0x3d0] sm:$0xff] %vm408, %v273
        %532 = vst.msk [vmem:[%s140 + $0x3d8] sm:$0xff] %vm408, %v274
        %533 = vst.msk [vmem:[%s140 + $0x3e0] sm:$0xff] %vm408, %v275
        %534 = vst.msk [vmem:[%s140 + $0x3e8] sm:$0xff] %vm408, %v276
        %535 = vst.msk [vmem:[%s140 + $0x3f0] sm:$0xff] %vm408, %v277
        %536 = vst.msk [vmem:[%s140 + $0x3f8] sm:$0xff] %vm408, %v278
        %537 = vst.msk [vmem:[%s140 + $0x400] sm:$0xff] %vm408, %v279
        %538 = vst.msk [vmem:[%s140 + $0x408] sm:$0xff] %vm408, %v280
        %539 = vst.msk [vmem:[%s140 + $0x410] sm:$0xff] %vm408, %v281
        %540 = vst.msk [vmem:[%s140 + $0x418] sm:$0xff] %vm408, %v282
        %541 = vst.msk [vmem:[%s140 + $0x420] sm:$0xff] %vm408, %v283
        %542 = vst.msk [vmem:[%s140 + $0x428] sm:$0xff] %vm408, %v284
        %543 = vst.msk [vmem:[%s140 + $0x430] sm:$0xff] %vm408, %v285
        %544 = vst.msk [vmem:[%s140 + $0x438] sm:$0xff] %vm408, %v286
        %545 = vst.msk [vmem:[%s140 + $0x440] sm:$0xff] %vm408, %v287
        %546 = vst.msk [vmem:[%s140 + $0x448] sm:$0xff] %vm408, %v288
        %547 = vst.msk [vmem:[%s140 + $0x450] sm:$0xff] %vm408, %v289
        %548 = vst.msk [vmem:[%s140 + $0x458] sm:$0xff] %vm408, %v290
        %549 = vst.msk [vmem:[%s140 + $0x460] sm:$0xff] %vm408, %v291
        %550 = vst.msk [vmem:[%s140 + $0x468] sm:$0xff] %vm408, %v292
        %551 = vst.msk [vmem:[%s140 + $0x470] sm:$0xff] %vm408, %v293
        %552 = vst.msk [vmem:[%s140 + $0x478] sm:$0xff] %vm408, %v294
        %553 = vst.msk [vmem:[%s140 + $0x480] sm:$0xff] %vm408, %v295
        %554 = vst.msk [vmem:[%s140 + $0x488] sm:$0xff] %vm408, %v296
        %555 = vst.msk [vmem:[%s140 + $0x490] sm:$0xff] %vm408, %v297
        %556 = vst.msk [vmem:[%s140 + $0x498] sm:$0xff] %vm408, %v298
        %557 = vst.msk [vmem:[%s140 + $0x4a0] sm:$0xff] %vm408, %v299
        %558 = vst.msk [vmem:[%s140 + $0x4a8] sm:$0xff] %vm408, %v300
        %559 = vst.msk [vmem:[%s140 + $0x4b0] sm:$0xff] %vm408, %v301
        %560 = vst.msk [vmem:[%s140 + $0x4b8] sm:$0xff] %vm408, %v302
        %561 = vst.msk [vmem:[%s140 + $0x4c0] sm:$0xff] %vm408, %v303
        %562 = vst.msk [vmem:[%s140 + $0x4c8] sm:$0xff] %vm408, %v304
        %563 = vst.msk [vmem:[%s140 + $0x4d0] sm:$0xff] %vm408, %v305
        %564 = vst.msk [vmem:[%s140 + $0x4d8] sm:$0xff] %vm408, %v306
        %565 = vst.msk [vmem:[%s140 + $0x4e0] sm:$0xff] %vm408, %v307
        %566 = vst.msk [vmem:[%s140 + $0x4e8] sm:$0xff] %vm408, %v308
        %567 = vst.msk [vmem:[%s140 + $0x4f0] sm:$0xff] %vm408, %v309
        %568 = vst.msk [vmem:[%s140 + $0x4f8] sm:$0xff] %vm408, %v310
        %569 = vst.msk [vmem:[%s140 + $0x500] sm:$0xff] %vm408, %v311
        %570 = vst.msk [vmem:[%s140 + $0x508] sm:$0xff] %vm408, %v312
        %571 = vst.msk [vmem:[%s140 + $0x510] sm:$0xff] %vm408, %v313
        %572 = vst.msk [vmem:[%s140 + $0x518] sm:$0xff] %vm408, %v314
        %573 = vst.msk [vmem:[%s140 + $0x520] sm:$0xff] %vm408, %v315
        %574 = vst.msk [vmem:[%s140 + $0x528] sm:$0xff] %vm408, %v316
        %575 = vst.msk [vmem:[%s140 + $0x530] sm:$0xff] %vm408, %v317
        %576 = vst.msk [vmem:[%s140 + $0x538] sm:$0xff] %vm408, %v318
        %577 = vst.msk [vmem:[%s140 + $0x540] sm:$0xff] %vm408, %v319
        %578 = vst.msk [vmem:[%s140 + $0x548] sm:$0xff] %vm408, %v320
        %579 = vst.msk [vmem:[%s140 + $0x550] sm:$0xff] %vm408, %v321
        %580 = vst.msk [vmem:[%s140 + $0x558] sm:$0xff] %vm408, %v322
        %581 = vst.msk [vmem:[%s140 + $0x560] sm:$0xff] %vm408, %v323
        %582 = vst.msk [vmem:[%s140 + $0x568] sm:$0xff] %vm408, %v324
        %583 = vst.msk [vmem:[%s140 + $0x570] sm:$0xff] %vm408, %v325
        %584 = vst.msk [vmem:[%s140 + $0x578] sm:$0xff] %vm408, %v326
        %585 = vst.msk [vmem:[%s140 + $0x580] sm:$0xff] %vm408, %v327
        %586 = vst.msk [vmem:[%s140 + $0x588] sm:$0xff] %vm408, %v328
        %587 = vst.msk [vmem:[%s140 + $0x590] sm:$0xff] %vm408, %v329
        %588 = vst.msk [vmem:[%s140 + $0x598] sm:$0xff] %vm408, %v330
        %589 = vst.msk [vmem:[%s140 + $0x5a0] sm:$0xff] %vm408, %v331
        %590 = vst.msk [vmem:[%s140 + $0x5a8] sm:$0xff] %vm408, %v332
        %591 = vst.msk [vmem:[%s140 + $0x5b0] sm:$0xff] %vm408, %v333
        %592 = vst.msk [vmem:[%s140 + $0x5b8] sm:$0xff] %vm408, %v334
        %593 = vst.msk [vmem:[%s140 + $0x5c0] sm:$0xff] %vm408, %v335
        %594 = vst.msk [vmem:[%s140 + $0x5c8] sm:$0xff] %vm408, %v336
        %595 = vst.msk [vmem:[%s140 + $0x5d0] sm:$0xff] %vm408, %v337
        %596 = vst.msk [vmem:[%s140 + $0x5d8] sm:$0xff] %vm408, %v338
        %597 = vst.msk [vmem:[%s140 + $0x5e0] sm:$0xff] %vm408, %v339
        %598 = vst.msk [vmem:[%s140 + $0x5e8] sm:$0xff] %vm408, %v340
        %599 = vst.msk [vmem:[%s140 + $0x5f0] sm:$0xff] %vm408, %v341
        %600 = vst.msk [vmem:[%s140 + $0x5f8] sm:$0xff] %vm408, %v342
        %601 = vst.msk [vmem:[%s140 + $0x600] sm:$0xff] %vm408, %v343
        %602 = vst.msk [vmem:[%s140 + $0x608] sm:$0xff] %vm408, %v344
        %603 = vst.msk [vmem:[%s140 + $0x610] sm:$0xff] %vm408, %v345
        %604 = vst.msk [vmem:[%s140 + $0x618] sm:$0xff] %vm408, %v346
        %605 = vst.msk [vmem:[%s140 + $0x620] sm:$0xff] %vm408, %v347
        %606 = vst.msk [vmem:[%s140 + $0x628] sm:$0xff] %vm408, %v348
        %607 = vst.msk [vmem:[%s140 + $0x630] sm:$0xff] %vm408, %v349
        %608 = vst.msk [vmem:[%s140 + $0x638] sm:$0xff] %vm408, %v350
        %609 = vst.msk [vmem:[%s140 + $0x640] sm:$0xff] %vm408, %v351
        %610 = vst.msk [vmem:[%s140 + $0x648] sm:$0xff] %vm408, %v352
        %611 = vst.msk [vmem:[%s140 + $0x650] sm:$0xff] %vm408, %v353
        %612 = vst.msk [vmem:[%s140 + $0x658] sm:$0xff] %vm408, %v354
        %613 = vst.msk [vmem:[%s140 + $0x660] sm:$0xff] %vm408, %v355
        %614 = vst.msk [vmem:[%s140 + $0x668] sm:$0xff] %vm408, %v356
        %615 = vst.msk [vmem:[%s140 + $0x670] sm:$0xff] %vm408, %v357
        %616 = vst.msk [vmem:[%s140 + $0x678] sm:$0xff] %vm408, %v358
        %617 = vst.msk [vmem:[%s140 + $0x680] sm:$0xff] %vm408, %v359
        %618 = vst.msk [vmem:[%s140 + $0x688] sm:$0xff] %vm408, %v360
        %619 = vst.msk [vmem:[%s140 + $0x690] sm:$0xff] %vm408, %v361
        %620 = vst.msk [vmem:[%s140 + $0x698] sm:$0xff] %vm408, %v362
        %621 = vst.msk [vmem:[%s140 + $0x6a0] sm:$0xff] %vm408, %v363
        %622 = vst.msk [vmem:[%s140 + $0x6a8] sm:$0xff] %vm408, %v364
        %623 = vst.msk [vmem:[%s140 + $0x6b0] sm:$0xff] %vm408, %v365
        %624 = vst.msk [vmem:[%s140 + $0x6b8] sm:$0xff] %vm408, %v366
        %625 = vst.msk [vmem:[%s140 + $0x6c0] sm:$0xff] %vm408, %v367
        %626 = vst.msk [vmem:[%s140 + $0x6c8] sm:$0xff] %vm408, %v368
        %627 = vst.msk [vmem:[%s140 + $0x6d0] sm:$0xff] %vm408, %v369
        %628 = vst.msk [vmem:[%s140 + $0x6d8] sm:$0xff] %vm408, %v370
        %629 = vst.msk [vmem:[%s140 + $0x6e0] sm:$0xff] %vm408, %v371
        %630 = vst.msk [vmem:[%s140 + $0x6e8] sm:$0xff] %vm408, %v372
        %631 = vst.msk [vmem:[%s140 + $0x6f0] sm:$0xff] %vm408, %v373
        %632 = vst.msk [vmem:[%s140 + $0x6f8] sm:$0xff] %vm408, %v374
        %633 = vst.msk [vmem:[%s140 + $0x700] sm:$0xff] %vm408, %v375
        %634 = vst.msk [vmem:[%s140 + $0x708] sm:$0xff] %vm408, %v376
        %635 = vst.msk [vmem:[%s140 + $0x710] sm:$0xff] %vm408, %v377
        %636 = vst.msk [vmem:[%s140 + $0x718] sm:$0xff] %vm408, %v378
        %637 = vst.msk [vmem:[%s140 + $0x720] sm:$0xff] %vm408, %v379
        %638 = vst.msk [vmem:[%s140 + $0x728] sm:$0xff] %vm408, %v380
        %639 = vst.msk [vmem:[%s140 + $0x730] sm:$0xff] %vm408, %v381
        %640 = vst.msk [vmem:[%s140 + $0x738] sm:$0xff] %vm408, %v382
        %641 = vst.msk [vmem:[%s140 + $0x740] sm:$0xff] %vm408, %v383
        %642 = vst.msk [vmem:[%s140 + $0x748] sm:$0xff] %vm408, %v384
        %643 = vst.msk [vmem:[%s140 + $0x750] sm:$0xff] %vm408, %v385
        %644 = vst.msk [vmem:[%s140 + $0x758] sm:$0xff] %vm408, %v386
        %645 = vst.msk [vmem:[%s140 + $0x760] sm:$0xff] %vm408, %v387
        %646 = vst.msk [vmem:[%s140 + $0x768] sm:$0xff] %vm408, %v388
        %647 = vst.msk [vmem:[%s140 + $0x770] sm:$0xff] %vm408, %v389
        %648 = vst.msk [vmem:[%s140 + $0x778] sm:$0xff] %vm408, %v390
        %649 = vst.msk [vmem:[%s140 + $0x780] sm:$0xff] %vm408, %v391
        %650 = vst.msk [vmem:[%s140 + $0x788] sm:$0xff] %vm408, %v392
        %651 = vst.msk [vmem:[%s140 + $0x790] sm:$0xff] %vm408, %v393
        %652 = vst.msk [vmem:[%s140 + $0x798] sm:$0xff] %vm408, %v394
        %653 = vst.msk [vmem:[%s140 + $0x7a0] sm:$0xff] %vm408, %v395
        %654 = vst.msk [vmem:[%s140 + $0x7a8] sm:$0xff] %vm408, %v396
        %655 = vst.msk [vmem:[%s140 + $0x7b0] sm:$0xff] %vm408, %v397
        %656 = vst.msk [vmem:[%s140 + $0x7b8] sm:$0xff] %vm408, %v398
        %657 = vst.msk [vmem:[%s140 + $0x7c0] sm:$0xff] %vm408, %v399
        %658 = vst.msk [vmem:[%s140 + $0x7c8] sm:$0xff] %vm408, %v400
        %659 = vst.msk [vmem:[%s140 + $0x7d0] sm:$0xff] %vm408, %v401
        %660 = vst.msk [vmem:[%s140 + $0x7d8] sm:$0xff] %vm408, %v402
        %661 = vst.msk [vmem:[%s140 + $0x7e0] sm:$0xff] %vm408, %v403
        %662 = vst.msk [vmem:[%s140 + $0x7e8] sm:$0xff] %vm408, %v404
        %663 = vst.msk [vmem:[%s140 + $0x7f0] sm:$0xff] %vm408, %v405
        %664 = vst.msk [vmem:[%s140 + $0x7f8] sm:$0xff] %vm408, %v406
        %665 = vst.msk [vmem:[%s140 + $0x800] sm:$0xff] %vm408, %v407
        %s666 = sand.u32 %s49, 1
        %s667 = sand.u32 %s49, 1
        %s668 = smul.addr %s667, 2056
        %s669 = scalar_lea.vmem [#allocation4], %s668
        // Predicated region
        $region29: #{tpu_custom_call.1} parent=23 // pred_check
          %p670 = pneg %p59
        $region30: #{tpu_custom_call.1} parent=23 // pred_check_branch
          %672 = sbr.rel (%p670) target = $region32
        $region31: #{tpu_custom_call.1} parent=23 // pred_region
          %s673 = smul.u32 257, %s15
          %s674 = ssub.s32 513, %s673
          %p675 = scmp.lt.s32.totalorder %s674, 257
          %s676 = scalar_select %p675, %s674, 257
          %s677 = smul.u32 8, %s676
          %p678 = scmp.ne.s32.totalorder 0, %s677
          %s679 = smul.addr %s673, 8
          %s680 = scalar_lea.vmem %s1, %s679
          // Predicated region
          $region33: #{tpu_custom_call.1} parent=31 // pred_check
            %p681 = pneg %p678
          $region34: #{tpu_custom_call.1} parent=31 // pred_check_branch
            %683 = sbr.rel (%p681) target = $region36
          $region35: #{tpu_custom_call.1} parent=31 // pred_region
            // Predicated region
            $region37: #{tpu_custom_call.1} parent=35 // pred_check
              _
            $region38: #{tpu_custom_call.1} parent=35 // pred_check_branch
              %685 = sbr.rel (0) target = $region40
            $region39: #{tpu_custom_call.1} parent=35 // pred_region
              // Predicated region
              $region59: #{tpu_custom_call.1} parent=39 // pred_check
                _
              $region60: #{tpu_custom_call.1} parent=39 // pred_check_branch
                %797 = sbr.rel (0) target = $region62
              $region61: #{tpu_custom_call.1} parent=39 // pred_region
                %s798 = sshrl.u32 %s676, 5
                // While loop
                $region63: #{tpu_custom_call.1} parent=61 // loop_pre_header
                  _
                $region64: #{tpu_custom_call.1} parent=61 // loop_header
                  %s800 = sphi 0, %s802
                  %p801 = scmp.ge.s32.totalorder %s800, %s798
                  %s805 = sphi 0, %s874
                  %s806 = sphi %s669, %s877
                  %s807 = sphi %s680, %s878
                $region65: #{tpu_custom_call.1} parent=61 // loop_header_branch
                  %804 = sbr.rel (%p801) target = $region69
                $region66: #{tpu_custom_call.1} parent=61 // loop_body
                  %v808 = vld [vmem:[%s806] sm:$0xff]
                  %809 = vst [vmem:[%s807] sm:$0xff] %v808
                  %v810 = vld [vmem:[%s806 + $0x8] sm:$0xff]
                  %811 = vst [vmem:[%s807 + $0x8] sm:$0xff] %v810
                  %v812 = vld [vmem:[%s806 + $0x10] sm:$0xff]
                  %813 = vst [vmem:[%s807 + $0x10] sm:$0xff] %v812
                  %v814 = vld [vmem:[%s806 + $0x18] sm:$0xff]
                  %815 = vst [vmem:[%s807 + $0x18] sm:$0xff] %v814
                  %v816 = vld [vmem:[%s806 + $0x20] sm:$0xff]
                  %817 = vst [vmem:[%s807 + $0x20] sm:$0xff] %v816
                  %v818 = vld [vmem:[%s806 + $0x28] sm:$0xff]
                  %819 = vst [vmem:[%s807 + $0x28] sm:$0xff] %v818
                  %v820 = vld [vmem:[%s806 + $0x30] sm:$0xff]
                  %821 = vst [vmem:[%s807 + $0x30] sm:$0xff] %v820
                  %v822 = vld [vmem:[%s806 + $0x38] sm:$0xff]
                  %823 = vst [vmem:[%s807 + $0x38] sm:$0xff] %v822
                  %v824 = vld [vmem:[%s806 + $0x40] sm:$0xff]
                  %825 = vst [vmem:[%s807 + $0x40] sm:$0xff] %v824
                  %v826 = vld [vmem:[%s806 + $0x48] sm:$0xff]
                  %827 = vst [vmem:[%s807 + $0x48] sm:$0xff] %v826
                  %v828 = vld [vmem:[%s806 + $0x50] sm:$0xff]
                  %829 = vst [vmem:[%s807 + $0x50] sm:$0xff] %v828
                  %v830 = vld [vmem:[%s806 + $0x58] sm:$0xff]
                  %831 = vst [vmem:[%s807 + $0x58] sm:$0xff] %v830
                  %v832 = vld [vmem:[%s806 + $0x60] sm:$0xff]
                  %833 = vst [vmem:[%s807 + $0x60] sm:$0xff] %v832
                  %v834 = vld [vmem:[%s806 + $0x68] sm:$0xff]
                  %835 = vst [vmem:[%s807 + $0x68] sm:$0xff] %v834
                  %v836 = vld [vmem:[%s806 + $0x70] sm:$0xff]
                  %837 = vst [vmem:[%s807 + $0x70] sm:$0xff] %v836
                  %v838 = vld [vmem:[%s806 + $0x78] sm:$0xff]
                  %839 = vst [vmem:[%s807 + $0x78] sm:$0xff] %v838
                  %v840 = vld [vmem:[%s806 + $0x80] sm:$0xff]
                  %841 = vst [vmem:[%s807 + $0x80] sm:$0xff] %v840
                  %v842 = vld [vmem:[%s806 + $0x88] sm:$0xff]
                  %843 = vst [vmem:[%s807 + $0x88] sm:$0xff] %v842
                  %v844 = vld [vmem:[%s806 + $0x90] sm:$0xff]
                  %845 = vst [vmem:[%s807 + $0x90] sm:$0xff] %v844
                  %v846 = vld [vmem:[%s806 + $0x98] sm:$0xff]
                  %847 = vst [vmem:[%s807 + $0x98] sm:$0xff] %v846
                  %v848 = vld [vmem:[%s806 + $0xa0] sm:$0xff]
                  %849 = vst [vmem:[%s807 + $0xa0] sm:$0xff] %v848
                  %v850 = vld [vmem:[%s806 + $0xa8] sm:$0xff]
                  %851 = vst [vmem:[%s807 + $0xa8] sm:$0xff] %v850
                  %v852 = vld [vmem:[%s806 + $0xb0] sm:$0xff]
                  %853 = vst [vmem:[%s807 + $0xb0] sm:$0xff] %v852
                  %v854 = vld [vmem:[%s806 + $0xb8] sm:$0xff]
                  %855 = vst [vmem:[%s807 + $0xb8] sm:$0xff] %v854
                  %v856 = vld [vmem:[%s806 + $0xc0] sm:$0xff]
                  %857 = vst [vmem:[%s807 + $0xc0] sm:$0xff] %v856
                  %v858 = vld [vmem:[%s806 + $0xc8] sm:$0xff]
                  %859 = vst [vmem:[%s807 + $0xc8] sm:$0xff] %v858
                  %v860 = vld [vmem:[%s806 + $0xd0] sm:$0xff]
                  %861 = vst [vmem:[%s807 + $0xd0] sm:$0xff] %v860
                  %v862 = vld [vmem:[%s806 + $0xd8] sm:$0xff]
                  %863 = vst [vmem:[%s807 + $0xd8] sm:$0xff] %v862
                  %v864 = vld [vmem:[%s806 + $0xe0] sm:$0xff]
                  %865 = vst [vmem:[%s807 + $0xe0] sm:$0xff] %v864
                  %v866 = vld [vmem:[%s806 + $0xe8] sm:$0xff]
                  %867 = vst [vmem:[%s807 + $0xe8] sm:$0xff] %v866
                  %v868 = vld [vmem:[%s806 + $0xf0] sm:$0xff]
                  %869 = vst [vmem:[%s807 + $0xf0] sm:$0xff] %v868
                  %v870 = vld [vmem:[%s806 + $0xf8] sm:$0xff]
                  %871 = vst [vmem:[%s807 + $0xf8] sm:$0xff] %v870
                  %s872 = sadd.s32 1, %s805
                  %p873 = scmp.ge.s32.totalorder %s872, %s798
                  %s874 = scalar_select %p873, 0, %s872
                  %s875 = smul.u32 %s874, 256
                  %s876 = smul.u32 %s874, 256
                  %s877 = scalar_lea.vmem %s669, %s875 [#allocation4]
                  %s878 = scalar_lea.vmem %s680, %s876
                $region67: #{tpu_custom_call.1} parent=61 // loop_footer
                  %s802 = sadd.s32 %s800, 1
                $region68: #{tpu_custom_call.1} parent=61 // loop_footer_branch
                  %799 = sbr.rel target = $region64
                $region69: #{tpu_custom_call.1} parent=61 // loop_exit
                  _
                %s879 = sshrl.u32 %s676, 5
                %s880 = sand.u32 %s676, 31
                %s881 = smul.u32 %s879, 32
                %s882 = smul.u32 8, %s881
                %s883 = scalar_lea.vmem %s669, %s882 [#allocation4]
                %s884 = smul.u32 8, %s881
                %s885 = scalar_lea.vmem %s680, %s884
                // While loop
                $region70: #{tpu_custom_call.1} parent=61 // loop_pre_header
                  _
                $region71: #{tpu_custom_call.1} parent=61 // loop_header
                  %s887 = sphi 0, %s889
                  %p888 = scmp.ge.s32.totalorder %s887, %s880
                  %s892 = sphi 0, %s899
                  %s893 = sphi %s883, %s902
                  %s894 = sphi %s885, %s903
                $region72: #{tpu_custom_call.1} parent=61 // loop_header_branch
                  %891 = sbr.rel (%p888) target = $region76
                $region73: #{tpu_custom_call.1} parent=61 // loop_body
                  %v895 = vld [vmem:[%s893] sm:$0xff]
                  %896 = vst [vmem:[%s894] sm:$0xff] %v895
                  %s897 = sadd.s32 1, %s892
                  %p898 = scmp.ge.s32.totalorder %s897, %s880
                  %s899 = scalar_select %p898, 0, %s897
                  %s900 = smul.u32 %s899, 8
                  %s901 = smul.u32 %s899, 8
                  %s902 = scalar_lea.vmem %s883, %s900 [#allocation4]
                  %s903 = scalar_lea.vmem %s885, %s901
                $region74: #{tpu_custom_call.1} parent=61 // loop_footer
                  %s889 = sadd.s32 %s887, 1
                $region75: #{tpu_custom_call.1} parent=61 // loop_footer_branch
                  %886 = sbr.rel target = $region71
                $region76: #{tpu_custom_call.1} parent=61 // loop_exit
                  _
              $region62: #{tpu_custom_call.1} parent=39 // pred_fallthru
                _
              // Predicated region
              $region77: #{tpu_custom_call.1} parent=39 // pred_check
                _
              $region78: #{tpu_custom_call.1} parent=39 // pred_check_branch
                %905 = sbr.rel target = $region80
              $region79: #{tpu_custom_call.1} parent=39 // pred_region
                _
              $region80: #{tpu_custom_call.1} parent=39 // pred_fallthru
                _
            $region40: #{tpu_custom_call.1} parent=35 // pred_fallthru
              _
            // Predicated region
            $region41: #{tpu_custom_call.1} parent=35 // pred_check
              _
            $region42: #{tpu_custom_call.1} parent=35 // pred_check_branch
              %687 = sbr.rel target = $region44
            $region43: #{tpu_custom_call.1} parent=35 // pred_region
              %s689 = ssub.s32 256, 1
              %s690 = sshrl.u32 %s676, 5
              // While loop
              $region45: #{tpu_custom_call.1} parent=43 // loop_pre_header
                _
              $region46: #{tpu_custom_call.1} parent=43 // loop_header
                %s692 = sphi 0, %s694
                %p693 = scmp.ge.s32.totalorder %s692, %s690
                %s697 = sphi 0, %s766
                %s698 = sphi %s669, %s769
                %s699 = sphi %s680, %s770
              $region47: #{tpu_custom_call.1} parent=43 // loop_header_branch
                %696 = sbr.rel (%p693) target = $region51
              $region48: #{tpu_custom_call.1} parent=43 // loop_body
                %v700 = vld [vmem:[%s698] sm:%s689]
                %701 = vst [vmem:[%s699] sm:%s689] %v700
                %v702 = vld [vmem:[%s698 + $0x8] sm:%s689]
                %703 = vst [vmem:[%s699 + $0x8] sm:%s689] %v702
                %v704 = vld [vmem:[%s698 + $0x10] sm:%s689]
                %705 = vst [vmem:[%s699 + $0x10] sm:%s689] %v704
                %v706 = vld [vmem:[%s698 + $0x18] sm:%s689]
                %707 = vst [vmem:[%s699 + $0x18] sm:%s689] %v706
                %v708 = vld [vmem:[%s698 + $0x20] sm:%s689]
                %709 = vst [vmem:[%s699 + $0x20] sm:%s689] %v708
                %v710 = vld [vmem:[%s698 + $0x28] sm:%s689]
                %711 = vst [vmem:[%s699 + $0x28] sm:%s689] %v710
                %v712 = vld [vmem:[%s698 + $0x30] sm:%s689]
                %713 = vst [vmem:[%s699 + $0x30] sm:%s689] %v712
                %v714 = vld [vmem:[%s698 + $0x38] sm:%s689]
                %715 = vst [vmem:[%s699 + $0x38] sm:%s689] %v714
                %v716 = vld [vmem:[%s698 + $0x40] sm:%s689]
                %717 = vst [vmem:[%s699 + $0x40] sm:%s689] %v716
                %v718 = vld [vmem:[%s698 + $0x48] sm:%s689]
                %719 = vst [vmem:[%s699 + $0x48] sm:%s689] %v718
                %v720 = vld [vmem:[%s698 + $0x50] sm:%s689]
                %721 = vst [vmem:[%s699 + $0x50] sm:%s689] %v720
                %v722 = vld [vmem:[%s698 + $0x58] sm:%s689]
                %723 = vst [vmem:[%s699 + $0x58] sm:%s689] %v722
                %v724 = vld [vmem:[%s698 + $0x60] sm:%s689]
                %725 = vst [vmem:[%s699 + $0x60] sm:%s689] %v724
                %v726 = vld [vmem:[%s698 + $0x68] sm:%s689]
                %727 = vst [vmem:[%s699 + $0x68] sm:%s689] %v726
                %v728 = vld [vmem:[%s698 + $0x70] sm:%s689]
                %729 = vst [vmem:[%s699 + $0x70] sm:%s689] %v728
                %v730 = vld [vmem:[%s698 + $0x78] sm:%s689]
                %731 = vst [vmem:[%s699 + $0x78] sm:%s689] %v730
                %v732 = vld [vmem:[%s698 + $0x80] sm:%s689]
                %733 = vst [vmem:[%s699 + $0x80] sm:%s689] %v732
                %v734 = vld [vmem:[%s698 + $0x88] sm:%s689]
                %735 = vst [vmem:[%s699 + $0x88] sm:%s689] %v734
                %v736 = vld [vmem:[%s698 + $0x90] sm:%s689]
                %737 = vst [vmem:[%s699 + $0x90] sm:%s689] %v736
                %v738 = vld [vmem:[%s698 + $0x98] sm:%s689]
                %739 = vst [vmem:[%s699 + $0x98] sm:%s689] %v738
                %v740 = vld [vmem:[%s698 + $0xa0] sm:%s689]
                %741 = vst [vmem:[%s699 + $0xa0] sm:%s689] %v740
                %v742 = vld [vmem:[%s698 + $0xa8] sm:%s689]
                %743 = vst [vmem:[%s699 + $0xa8] sm:%s689] %v742
                %v744 = vld [vmem:[%s698 + $0xb0] sm:%s689]
                %745 = vst [vmem:[%s699 + $0xb0] sm:%s689] %v744
                %v746 = vld [vmem:[%s698 + $0xb8] sm:%s689]
                %747 = vst [vmem:[%s699 + $0xb8] sm:%s689] %v746
                %v748 = vld [vmem:[%s698 + $0xc0] sm:%s689]
                %749 = vst [vmem:[%s699 + $0xc0] sm:%s689] %v748
                %v750 = vld [vmem:[%s698 + $0xc8] sm:%s689]
                %751 = vst [vmem:[%s699 + $0xc8] sm:%s689] %v750
                %v752 = vld [vmem:[%s698 + $0xd0] sm:%s689]
                %753 = vst [vmem:[%s699 + $0xd0] sm:%s689] %v752
                %v754 = vld [vmem:[%s698 + $0xd8] sm:%s689]
                %755 = vst [vmem:[%s699 + $0xd8] sm:%s689] %v754
                %v756 = vld [vmem:[%s698 + $0xe0] sm:%s689]
                %757 = vst [vmem:[%s699 + $0xe0] sm:%s689] %v756
                %v758 = vld [vmem:[%s698 + $0xe8] sm:%s689]
                %759 = vst [vmem:[%s699 + $0xe8] sm:%s689] %v758
                %v760 = vld [vmem:[%s698 + $0xf0] sm:%s689]
                %761 = vst [vmem:[%s699 + $0xf0] sm:%s689] %v760
                %v762 = vld [vmem:[%s698 + $0xf8] sm:%s689]
                %763 = vst [vmem:[%s699 + $0xf8] sm:%s689] %v762
                %s764 = sadd.s32 1, %s697
                %p765 = scmp.ge.s32.totalorder %s764, %s690
                %s766 = scalar_select %p765, 0, %s764
                %s767 = smul.u32 %s766, 256
                %s768 = smul.u32 %s766, 256
                %s769 = scalar_lea.vmem %s669, %s767 [#allocation4]
                %s770 = scalar_lea.vmem %s680, %s768
              $region49: #{tpu_custom_call.1} parent=43 // loop_footer
                %s694 = sadd.s32 %s692, 1
              $region50: #{tpu_custom_call.1} parent=43 // loop_footer_branch
                %691 = sbr.rel target = $region46
              $region51: #{tpu_custom_call.1} parent=43 // loop_exit
                _
              %s771 = sshrl.u32 %s676, 5
              %s772 = sand.u32 %s676, 31
              %s773 = smul.u32 %s771, 32
              %s774 = smul.u32 8, %s773
              %s775 = scalar_lea.vmem %s669, %s774 [#allocation4]
              %s776 = smul.u32 8, %s773
              %s777 = scalar_lea.vmem %s680, %s776
              // While loop
              $region52: #{tpu_custom_call.1} parent=43 // loop_pre_header
                _
              $region53: #{tpu_custom_call.1} parent=43 // loop_header
                %s779 = sphi 0, %s781
                %p780 = scmp.ge.s32.totalorder %s779, %s772
                %s784 = sphi 0, %s791
                %s785 = sphi %s775, %s794
                %s786 = sphi %s777, %s795
              $region54: #{tpu_custom_call.1} parent=43 // loop_header_branch
                %783 = sbr.rel (%p780) target = $region58
              $region55: #{tpu_custom_call.1} parent=43 // loop_body
                %v787 = vld [vmem:[%s785] sm:%s689]
                %788 = vst [vmem:[%s786] sm:%s689] %v787
                %s789 = sadd.s32 1, %s784
                %p790 = scmp.ge.s32.totalorder %s789, %s772
                %s791 = scalar_select %p790, 0, %s789
                %s792 = smul.u32 %s791, 8
                %s793 = smul.u32 %s791, 8
                %s794 = scalar_lea.vmem %s775, %s792 [#allocation4]
                %s795 = scalar_lea.vmem %s777, %s793
              $region56: #{tpu_custom_call.1} parent=43 // loop_footer
                %s781 = sadd.s32 %s779, 1
              $region57: #{tpu_custom_call.1} parent=43 // loop_footer_branch
                %778 = sbr.rel target = $region53
              $region58: #{tpu_custom_call.1} parent=43 // loop_exit
                _
            $region44: #{tpu_custom_call.1} parent=35 // pred_fallthru
              _
          $region36: #{tpu_custom_call.1} parent=31 // pred_fallthru
            _
          %906 = vnop
        $region32: #{tpu_custom_call.1} parent=23 // pred_fallthru
          _
      $region24: #{tpu_custom_call.1} parent=5 // pred_fallthru
        _
      %p907 = scmp.le.s32.totalorder 2, %s10
      // Predicated region
      $region81: #{tpu_custom_call.1} parent=5 // pred_check
        %p908 = pneg %p907
      $region82: #{tpu_custom_call.1} parent=5 // pred_check_branch
        %910 = sbr.rel (%p908) target = $region84
      $region83: #{tpu_custom_call.1} parent=5 // pred_region
        %s911 = ssub.s32 %s10, 2
        // Predicated region
        $region85: #{tpu_custom_call.1} parent=83 // pred_check
          %p912 = pneg %p65
        $region86: #{tpu_custom_call.1} parent=83 // pred_check_branch
          %914 = sbr.rel (%p912) target = $region88
        $region87: #{tpu_custom_call.1} parent=83 // pred_region
          %s915 = sand.u32 %s50, 1
          %s916 = sand.u32 %s50, 1
          %s917 = smul.addr %s916, 2056
          %s918 = scalar_lea.vmem [#allocation4], %s917
        $region88: #{tpu_custom_call.1} parent=83 // pred_fallthru
          _
      $region84: #{tpu_custom_call.1} parent=5 // pred_fallthru
        _
    $region6: #{tpu_custom_call.1} parent=1 // loop_footer
      %s14 = sadd.s32 1, %s10
    $region7: #{tpu_custom_call.1} parent=1 // loop_footer_branch
      %9 = sbr.rel target = $region3
    $region8: #{tpu_custom_call.1} parent=1 // loop_exit
      _
    %919 = vsyncpa [#allocation3], 1
    %s920 = scalar_lea.sflag [#allocation3], 1
    %921 = vsyncpa %s920, 1

</llo_original>
